<compile_context>
chip_gen: v7x
topology: tpu7x:2x2x1
jax: 0.10.0
libtpu: 0.0.40
codegen_flags: <defaults>
</compile_context>

<pallas_src>
import math

import jax
import jax.numpy as jnp
import numpy as np
from jax.experimental import pallas as pl
from jax.experimental.pallas import tpu as pltpu

# ----------------------- stand-in for global `args` ------------------------
BATCH = 2           # args.batch_size
USER_DIM = 32       # args.user_dim
NUM_USERS = 4       # users per dialogue
VOCAB = 64
VOCAB_PAD = 128     # lane-dense padded vocab / weight-slab lane width
EMB = 32            # token embedding dim (== USER_DIM so addressee embs add in)
N_DIG = 6           # dialogue sentences per sample
SENT_LEN = 8        # max tokens per dialogue sentence
JOIN_LEN = 16       # joined context length
RESP_LEN = 8        # response length
USE_TF_API = False  # args.use_tf_api
# TODO(synk): the `use_tf_api=True` transformer branch (length-aware API) is not
# implemented; only the non-tf_api call signature is reproduced.

# ---- activation-slab row layout (all sections are EMB=32 lanes wide) -------
MEM_OFF = 0                      # member  [NUM_USERS, EMB] (cols >= N_DIG zero)
SENT_OFF = 8                     # sent_repr padded N_DIG -> EMB rows
CTX_OFF = 40                     # ctx      [JOIN_LEN, EMB]
DEC_OFF = 56                     # dec      [RESP_LEN, EMB]
CTXT_OFF = 64                    # ctx^T    [EMB, EMB] (cols >= JOIN_LEN zero)
SLAB_ROWS = 96

# ---- weight-slab row layout (VOCAB_PAD=128 lanes wide) ---------------------
WU_OFF = 0                       # W_user in cols [0, USER_DIM)  -> lane-dense A
WQ_OFF = EMB                     # W_q    in cols [0, EMB)
WO_OFF = 2 * EMB                 # W_out  in cols [0, VOCAB)
W_ROWS = 3 * EMB


# ============================ fused Pallas kernel ===========================

def _asrgmpc_kernel(resp_ref, tgt_ref,        # SMEM int32 [B]
                    x_ref, w_ref,             # merged bf16 slabs (VMEM)
                    a_ref, out_ref):          # f32 outputs (VMEM, lane-dense)
    wu = w_ref[WU_OFF:WU_OFF + EMB, :]                     # [E, 128]
    wq = w_ref[WQ_OFF:WQ_OFF + EMB, :EMB]                  # [E, E]
    wo = w_ref[WO_OFF:WO_OFF + EMB, :]                     # [E, VOCAB_PAD]
    inv_sqrt_e = 1.0 / math.sqrt(EMB)

    # B=2, unrolled at trace time -> one grid step total (no pipeline overhead).
    for b in range(BATCH):
        member = x_ref[b, MEM_OFF:MEM_OFF + NUM_USERS, :]      # [U, E]
        sents = x_ref[b, SENT_OFF:SENT_OFF + EMB, :]           # [E, E]
        ctx = x_ref[b, CTX_OFF:CTX_OFF + JOIN_LEN, :]          # [S, E]
        dec0 = x_ref[b, DEC_OFF:DEC_OFF + RESP_LEN, :]         # [T, E]
        ctx_t = x_ref[b, CTXT_OFF:CTXT_OFF + EMB, :]           # [E, E]

        # ---- AdrSelection stand-in: A = tanh((member @ sent_repr) @ W_user) ----
        user_ctx = jnp.dot(member, sents,
                           preferred_element_type=jnp.float32)          # [U, E]
        a_full = jnp.tanh(jnp.dot(user_ctx.astype(jnp.bfloat16), wu,
                                  preferred_element_type=jnp.float32))  # [U, 128]
        # lane-dense f32 store; cols >= USER_DIM are exact zeros (tanh(0) = 0)
        a_ref[b] = a_full

        # ---- addressee gathers: dynamic row readback (no iota/where/reduce) ----
        r = jnp.clip(resp_ref[b], 0, NUM_USERS - 1)
        t = jnp.clip(tgt_ref[b], 0, NUM_USERS - 1)
        a_res = a_ref[b, pl.ds(r, 1), :][:, :EMB]              # [1, E] f32
        a_tgt = a_ref[b, pl.ds(t, 1), :][:, :EMB]              # [1, E] f32

        # ---- MyTransformer stand-in: addressee-conditioned attention decoder ---
        dec = dec0.astype(jnp.float32) + a_res + a_tgt                   # [T, E]
        q = jnp.dot(dec.astype(jnp.bfloat16), wq,
                    preferred_element_type=jnp.float32)                  # [T, E]
        scores = jnp.dot(q.astype(jnp.bfloat16), ctx_t,
                         preferred_element_type=jnp.float32)[:, :JOIN_LEN]
        scores = scores * inv_sqrt_e                                     # [T, S]
        m = scores.max(axis=-1, keepdims=True)
        p = jnp.exp(scores - m)
        attn = p * pl.reciprocal(p.sum(axis=-1, keepdims=True), approx=True)
        context = jnp.dot(attn.astype(jnp.bfloat16), ctx,
                          preferred_element_type=jnp.float32)            # [T, E]
        h = jnp.tanh(dec + context)
        out_ref[b] = jnp.dot(h.astype(jnp.bfloat16), wo,
                             preferred_element_type=jnp.float32)         # [T, 128]


def asrgmpc_fused(responder, target_user, x_slab, w_slab):
    B = x_slab.shape[0]
    return pl.pallas_call(
        _asrgmpc_kernel,
        out_shape=(jax.ShapeDtypeStruct((B, NUM_USERS, VOCAB_PAD), jnp.float32),
                   jax.ShapeDtypeStruct((B, RESP_LEN, VOCAB_PAD), jnp.float32)),
        in_specs=[pl.BlockSpec(memory_space=pltpu.MemorySpace.SMEM),
                  pl.BlockSpec(memory_space=pltpu.MemorySpace.SMEM),
                  pl.BlockSpec(memory_space=pltpu.MemorySpace.VMEM),
                  pl.BlockSpec(memory_space=pltpu.MemorySpace.VMEM)],
        out_specs=(pl.BlockSpec(memory_space=pltpu.MemorySpace.VMEM),
                   pl.BlockSpec(memory_space=pltpu.MemorySpace.VMEM)),
    )(responder, target_user, x_slab, w_slab)


# ============================== glue / wrapper ==============================

def init_params(key):
    k = jax.random.split(key, 5)
    scale = 0.05
    return {
        "tok_emb": scale * jax.random.normal(k[0], (VOCAB, EMB), jnp.float32),
        "W_user": scale * jax.random.normal(k[1], (EMB, USER_DIM), jnp.float32),
        "w_sel": scale * jax.random.normal(k[2], (USER_DIM, 1), jnp.float32),
        "W_q": scale * jax.random.normal(k[3], (EMB, EMB), jnp.float32),
        "W_out": scale * jax.random.normal(k[4], (EMB, VOCAB), jnp.float32),
    }


def _prep_adr_inputs(params, dig, dig_sent_length, dig_users):
    # embed dialogue tokens + masked mean-pool each sentence  -> [B, N, E]
    dig_emb = jnp.take(params["tok_emb"], dig, axis=0)                      # [B,N,L,E]
    mask = (jnp.arange(SENT_LEN)[None, None, :]
            < dig_sent_length[:, :, None]).astype(jnp.float32)              # [B,N,L]
    denom = jnp.maximum(dig_sent_length[..., None].astype(jnp.float32), 1.0)
    sent_repr = (dig_emb * mask[..., None]).sum(axis=2) / denom             # [B,N,E]
    # user membership averaging matrix [B, U, N]
    member = (dig_users[:, None, :]
              == jnp.arange(NUM_USERS)[None, :, None]).astype(jnp.float32)
    member = member / jnp.maximum(member.sum(axis=-1, keepdims=True), 1.0)
    return member, sent_repr


def _build_act_slab(member, sent_repr, ctx_emb, dec_emb):
    """Merge all per-batch activations into one [B, SLAB_ROWS, EMB] bf16 slab."""
    B = member.shape[0]
    slab = jnp.zeros((B, SLAB_ROWS, EMB), jnp.float32)
    slab = slab.at[:, MEM_OFF:MEM_OFF + NUM_USERS, :N_DIG].set(member)
    slab = slab.at[:, SENT_OFF:SENT_OFF + N_DIG, :].set(sent_repr)
    slab = slab.at[:, CTX_OFF:CTX_OFF + JOIN_LEN, :].set(ctx_emb)
    slab = slab.at[:, DEC_OFF:DEC_OFF + RESP_LEN, :].set(dec_emb)
    slab = slab.at[:, CTXT_OFF:CTXT_OFF + EMB, :JOIN_LEN].set(
        jnp.swapaxes(ctx_emb, 1, 2))
    return slab.astype(jnp.bfloat16)


def _build_w_slab(w_user, w_q, w_out):
    """Merge all weights into one [W_ROWS, 128] bf16 slab (zero-padded lanes)."""
    w = jnp.zeros((W_ROWS, VOCAB_PAD), jnp.float32)
    w = w.at[WU_OFF:WU_OFF + EMB, :USER_DIM].set(w_user)
    w = w.at[WQ_OFF:WQ_OFF + EMB, :EMB].set(w_q)
    w = w.at[WO_OFF:WO_OFF + EMB, :VOCAB].set(w_out)
    return w.astype(jnp.bfloat16)


@jax.jit
def asrgmpc_forward(params, dig, dig_sent_length, dig_users, responder,
                    join_sents, join_sents_length, response, response_length,
                    target_user):
    # ---- embedding / pooling prep (XLA gathers) ----
    member, sent_repr = _prep_adr_inputs(params, dig, dig_sent_length, dig_users)
    ctx_emb = jnp.take(params["tok_emb"], join_sents, axis=0)               # [B,S,E]
    dec_emb = jnp.take(params["tok_emb"], response, axis=0)                 # [B,T,E]

    x_slab = _build_act_slab(member, sent_repr, ctx_emb, dec_emb)
    w_slab = _build_w_slab(params["W_user"], params["W_q"], params["W_out"])

    # ---- one fused kernel: AdrSelection + addressee gathers + transformer ----
    A_pad, gen_pad = asrgmpc_fused(responder, target_user, x_slab, w_slab)
    A = A_pad[:, :, :USER_DIM]                                              # [B,U,D]
    generate_output = gen_pad[:, :, :VOCAB]                                 # [B,T,V]
    # select head + addressee returns computed from A in the wrapper (avoids
    # lane-sparse [1,32] kernel outputs and a wasted MXU pass in-kernel)
    select_output = jnp.einsum("bud,dk->buk", A, params["w_sel"])[..., 0]   # [B,U]
    b_idx = jnp.arange(A.shape[0])
    A_res = A[b_idx, responder]                                             # [B,D]
    A_tgt = A[b_idx, target_user]                                           # [B,D]
    return (select_output, generate_output, A_res, A_tgt)


# --------------------------- pure-JAX reference -----------------------------

def reference_forward(params, dig, dig_sent_length, dig_users, responder,
                      join_sents, join_sents_length, response, response_length,
                      target_user):
    member, sent_repr = _prep_adr_inputs(params, dig, dig_sent_length, dig_users)
    user_ctx = jnp.einsum("bun,bne->bue", member, sent_repr)
    A = jnp.tanh(jnp.einsum("bue,ed->bud", user_ctx, params["W_user"]))
    select_output = jnp.einsum("bud,dk->buk", A, params["w_sel"])[..., 0]
    b_idx = jnp.arange(BATCH)
    A_res = A[b_idx, responder]
    A_tgt = A[b_idx, target_user]
    ctx_emb = jnp.take(params["tok_emb"], join_sents, axis=0)
    dec_emb = jnp.take(params["tok_emb"], response, axis=0)
    dec = dec_emb + A_res[:, None, :] + A_tgt[:, None, :]
    q = jnp.einsum("bte,ef->btf", dec, params["W_q"])
    scores = jnp.einsum("bte,bse->bts", q, ctx_emb) / math.sqrt(EMB)
    attn = jax.nn.softmax(scores, axis=-1)
    context = jnp.einsum("bts,bse->bte", attn, ctx_emb)
    gen = jnp.einsum("bte,ev->btv", jnp.tanh(dec + context), params["W_out"])
    return select_output, gen, A_res, A_tgt


# ================================== main ====================================

if __name__ == "__main__":
    key = jax.random.PRNGKey(0)
    kp, k1, k2, k3, k4, k5, k6, k7, k8 = jax.random.split(key, 9)
    params = init_params(kp)

    dig = jax.random.randint(k1, (BATCH, N_DIG, SENT_LEN), 0, VOCAB, jnp.int32)
    dig_sent_length = jax.random.randint(k2, (BATCH, N_DIG), 1, SENT_LEN + 1, jnp.int32)
    dig_users = jax.random.randint(k3, (BATCH, N_DIG), 0, NUM_USERS, jnp.int32)
    responder = jax.random.randint(k4, (BATCH,), 0, NUM_USERS, jnp.int32)
    target_user = jax.random.randint(k5, (BATCH,), 0, NUM_USERS, jnp.int32)
    join_sents = jax.random.randint(k6, (BATCH, JOIN_LEN), 0, VOCAB, jnp.int32)
    join_sents_length = jax.random.randint(k7, (BATCH,), 1, JOIN_LEN + 1, jnp.int32)
    response = jax.random.randint(k8, (BATCH, RESP_LEN), 0, VOCAB, jnp.int32)
    response_length = jnp.full((BATCH,), RESP_LEN, jnp.int32)

    outs = asrgmpc_forward(params, dig, dig_sent_length, dig_users, responder,
                           join_sents, join_sents_length, response,
                           response_length, target_user)
    outs = jax.block_until_ready(outs)

    refs = reference_forward(params, dig, dig_sent_length, dig_users, responder,
                             join_sents, join_sents_length, response,
                             response_length, target_user)
    # Tolerances account for the bf16 streaming of activations/weights (f32
    # accumulation everywhere) and the approximate EUP reciprocal in softmax;
    # the reference is computed entirely in f32.
    tols = [(2e-2, 2e-3),   # (rtol, atol) select_output
            (2e-2, 1e-2),   # generate_output
            (2e-2, 2e-3),   # A_res
            (2e-2, 2e-3)]   # A_tgt
    for (got, want), (rt, at) in zip(zip(outs, refs), tols):
        np.testing.assert_allclose(np.asarray(got), np.asarray(want),
                                   rtol=rt, atol=at)
    print("KERNEL_OK")
</pallas_src>

<mosaic_0001>
module attributes {stable_mosaic.version = 11 : i64} {
  func.func @_asrgmpc_kernel(%arg0: memref<2xi32, #tpu.memory_space<smem>>, %arg1: memref<2xi32, #tpu.memory_space<smem>>, %arg2: memref<2x96x32xbf16, #tpu.memory_space<vmem>>, %arg3: memref<96x128xbf16, #tpu.memory_space<vmem>>, %arg4: memref<2x4x128xf32, #tpu.memory_space<vmem>>, %arg5: memref<2x8x128xf32, #tpu.memory_space<vmem>>) attributes {dimension_semantics = [], scalar_prefetch = 0 : i64, scratch_operands = 0 : i64, tpu.core_type = #tpu.core_type<tc>} {
    %c0 = arith.constant 0 : index
    %c0_0 = arith.constant 0 : index
    %0 = vector.load %arg3[%c0, %c0_0] : memref<96x128xbf16, #tpu.memory_space<vmem>>, vector<32x128xbf16>
    %c32 = arith.constant 32 : index
    %c0_1 = arith.constant 0 : index
    %1 = vector.load %arg3[%c32, %c0_1] : memref<96x128xbf16, #tpu.memory_space<vmem>>, vector<32x32xbf16>
    %c64 = arith.constant 64 : index
    %c0_2 = arith.constant 0 : index
    %2 = vector.load %arg3[%c64, %c0_2] : memref<96x128xbf16, #tpu.memory_space<vmem>>, vector<32x128xbf16>
    %c0_3 = arith.constant 0 : index
    %c0_4 = arith.constant 0 : index
    %c0_5 = arith.constant 0 : index
    %3 = vector.load %arg2[%c0_3, %c0_4, %c0_5] : memref<2x96x32xbf16, #tpu.memory_space<vmem>>, vector<1x4x32xbf16>
    %4 = vector.shape_cast %3 : vector<1x4x32xbf16> to vector<4x32xbf16>
    %c0_6 = arith.constant 0 : index
    %c8 = arith.constant 8 : index
    %c0_7 = arith.constant 0 : index
    %5 = vector.load %arg2[%c0_6, %c8, %c0_7] : memref<2x96x32xbf16, #tpu.memory_space<vmem>>, vector<1x32x32xbf16>
    %6 = vector.shape_cast %5 : vector<1x32x32xbf16> to vector<32x32xbf16>
    %c0_8 = arith.constant 0 : index
    %c40 = arith.constant 40 : index
    %c0_9 = arith.constant 0 : index
    %7 = vector.load %arg2[%c0_8, %c40, %c0_9] : memref<2x96x32xbf16, #tpu.memory_space<vmem>>, vector<1x16x32xbf16>
    %8 = vector.shape_cast %7 : vector<1x16x32xbf16> to vector<16x32xbf16>
    %c0_10 = arith.constant 0 : index
    %c56 = arith.constant 56 : index
    %c0_11 = arith.constant 0 : index
    %9 = vector.load %arg2[%c0_10, %c56, %c0_11] : memref<2x96x32xbf16, #tpu.memory_space<vmem>>, vector<1x8x32xbf16>
    %10 = vector.shape_cast %9 : vector<1x8x32xbf16> to vector<8x32xbf16>
    %c0_12 = arith.constant 0 : index
    %c64_13 = arith.constant 64 : index
    %c0_14 = arith.constant 0 : index
    %11 = vector.load %arg2[%c0_12, %c64_13, %c0_14] : memref<2x96x32xbf16, #tpu.memory_space<vmem>>, vector<1x32x32xbf16>
    %12 = vector.shape_cast %11 : vector<1x32x32xbf16> to vector<32x32xbf16>
    %cst = arith.constant dense<0.000000e+00> : vector<4x32xf32>
    %13 = tpu.matmul %4, %6, %cst {dimension_numbers = #tpu.dot_dimension_numbers<[1], [0], [0], [1], [0, 0, 1, 1], [], []>} : vector<4x32xbf16>, vector<32x32xbf16>, vector<4x32xf32> -> vector<4x32xf32>
    %14 = arith.truncf %13 : vector<4x32xf32> to vector<4x32xbf16>
    %cst_15 = arith.constant dense<0.000000e+00> : vector<4x128xf32>
    %15 = tpu.matmul %14, %0, %cst_15 {dimension_numbers = #tpu.dot_dimension_numbers<[1], [0], [0], [1], [0, 0, 1, 1], [], []>} : vector<4x32xbf16>, vector<32x128xbf16>, vector<4x128xf32> -> vector<4x128xf32>
    %16 = math.tanh %15 : vector<4x128xf32>
    %c0_16 = arith.constant 0 : index
    %c0_17 = arith.constant 0 : index
    %c0_18 = arith.constant 0 : index
    %17 = vector.load %arg4[%c0_16, %c0_17, %c0_18] : memref<2x4x128xf32, #tpu.memory_space<vmem>>, vector<1x4x128xf32>
    %18 = vector.shape_cast %17 : vector<1x4x128xf32> to vector<4x128xf32>
    %19 = vector.shape_cast %16 : vector<4x128xf32> to vector<1x4x128xf32>
    tpu.vector_store %arg4[%c0_16, %c0_17, %c0_18], %19 {strides = array<i32>} : memref<2x4x128xf32, #tpu.memory_space<vmem>>, vector<1x4x128xf32>,
    %c0_19 = arith.constant 0 : index
    %20 = memref.load %arg0[%c0_19] : memref<2xi32, #tpu.memory_space<smem>>
    %c0_i32 = arith.constant 0 : i32
    %c3_i32 = arith.constant 3 : i32
    %21 = arith.maxsi %c0_i32, %20 : i32
    %22 = arith.minsi %c3_i32, %21 : i32
    %c0_20 = arith.constant 0 : index
    %23 = memref.load %arg1[%c0_20] : memref<2xi32, #tpu.memory_space<smem>>
    %c0_i32_21 = arith.constant 0 : i32
    %c3_i32_22 = arith.constant 3 : i32
    %24 = arith.maxsi %c0_i32_21, %23 : i32
    %25 = arith.minsi %c3_i32_22, %24 : i32
    %c0_23 = arith.constant 0 : index
    %26 = arith.index_cast %22 : i32 to index
    %c0_24 = arith.constant 0 : index
    %27 = vector.load %arg4[%c0_23, %26, %c0_24] : memref<2x4x128xf32, #tpu.memory_space<vmem>>, vector<1x1x128xf32>
    %28 = vector.shape_cast %27 : vector<1x1x128xf32> to vector<1x128xf32>
    %29 = vector.extract_strided_slice %28 {offsets = [0, 0], sizes = [1, 32], strides = [1, 1]} : vector<1x128xf32> to vector<1x32xf32>
    %c0_25 = arith.constant 0 : index
    %30 = arith.index_cast %25 : i32 to index
    %c0_26 = arith.constant 0 : index
    %31 = vector.load %arg4[%c0_25, %30, %c0_26] : memref<2x4x128xf32, #tpu.memory_space<vmem>>, vector<1x1x128xf32>
    %32 = vector.shape_cast %31 : vector<1x1x128xf32> to vector<1x128xf32>
    %33 = vector.extract_strided_slice %32 {offsets = [0, 0], sizes = [1, 32], strides = [1, 1]} : vector<1x128xf32> to vector<1x32xf32>
    %34 = arith.extf %10 : vector<8x32xbf16> to vector<8x32xf32>
    %35 = vector.broadcast %29 : vector<1x32xf32> to vector<8x32xf32>
    %36 = arith.addf %34, %35 : vector<8x32xf32>
    %37 = vector.broadcast %33 : vector<1x32xf32> to vector<8x32xf32>
    %38 = arith.addf %36, %37 : vector<8x32xf32>
    %39 = arith.truncf %38 : vector<8x32xf32> to vector<8x32xbf16>
    %cst_27 = arith.constant dense<0.000000e+00> : vector<8x32xf32>
    %40 = tpu.matmul %39, %1, %cst_27 {dimension_numbers = #tpu.dot_dimension_numbers<[1], [0], [0], [1], [0, 0, 1, 1], [], []>} : vector<8x32xbf16>, vector<32x32xbf16>, vector<8x32xf32> -> vector<8x32xf32>
    %41 = arith.truncf %40 : vector<8x32xf32> to vector<8x32xbf16>
    %cst_28 = arith.constant dense<0.000000e+00> : vector<8x32xf32>
    %42 = tpu.matmul %41, %12, %cst_28 {dimension_numbers = #tpu.dot_dimension_numbers<[1], [0], [0], [1], [0, 0, 1, 1], [], []>} : vector<8x32xbf16>, vector<32x32xbf16>, vector<8x32xf32> -> vector<8x32xf32>
    %43 = vector.extract_strided_slice %42 {offsets = [0, 0], sizes = [8, 16], strides = [1, 1]} : vector<8x32xf32> to vector<8x16xf32>
    %cst_29 = arith.constant 0.176776692 : f32
    %44 = vector.broadcast %cst_29 : f32 to vector<8x16xf32>
    %45 = arith.mulf %43, %44 : vector<8x16xf32>
    %cst_30 = arith.constant dense<0xFF800000> : vector<8xf32>
    %46 = vector.multi_reduction <maximumf>, %45, %cst_30 [1] : vector<8x16xf32> to vector<8xf32>
    %47 = vector.shape_cast %46 : vector<8xf32> to vector<8x1xf32>
    %48 = vector.broadcast %47 : vector<8x1xf32> to vector<8x16xf32>
    %49 = arith.subf %45, %48 : vector<8x16xf32>
    %50 = math.exp %49 : vector<8x16xf32>
    %cst_31 = arith.constant dense<0.000000e+00> : vector<8xf32>
    %51 = vector.multi_reduction <add>, %50, %cst_31 [1] : vector<8x16xf32> to vector<8xf32>
    %52 = vector.shape_cast %51 : vector<8xf32> to vector<8x1xf32>
    %53 = tpu.reciprocal %52 {approx = true} : vector<8x1xf32> -> vector<8x1xf32>
    %54 = vector.broadcast %53 : vector<8x1xf32> to vector<8x16xf32>
    %55 = arith.mulf %50, %54 : vector<8x16xf32>
    %56 = arith.truncf %55 : vector<8x16xf32> to vector<8x16xbf16>
    %cst_32 = arith.constant dense<0.000000e+00> : vector<8x32xf32>
    %57 = tpu.matmul %56, %8, %cst_32 {dimension_numbers = #tpu.dot_dimension_numbers<[1], [0], [0], [1], [0, 0, 1, 1], [], []>} : vector<8x16xbf16>, vector<16x32xbf16>, vector<8x32xf32> -> vector<8x32xf32>
    %58 = arith.addf %38, %57 : vector<8x32xf32>
    %59 = math.tanh %58 : vector<8x32xf32>
    %60 = arith.truncf %59 : vector<8x32xf32> to vector<8x32xbf16>
    %cst_33 = arith.constant dense<0.000000e+00> : vector<8x128xf32>
    %61 = tpu.matmul %60, %2, %cst_33 {dimension_numbers = #tpu.dot_dimension_numbers<[1], [0], [0], [1], [0, 0, 1, 1], [], []>} : vector<8x32xbf16>, vector<32x128xbf16>, vector<8x128xf32> -> vector<8x128xf32>
    %c0_34 = arith.constant 0 : index
    %c0_35 = arith.constant 0 : index
    %c0_36 = arith.constant 0 : index
    %62 = vector.load %arg5[%c0_34, %c0_35, %c0_36] : memref<2x8x128xf32, #tpu.memory_space<vmem>>, vector<1x8x128xf32>
    %63 = vector.shape_cast %62 : vector<1x8x128xf32> to vector<8x128xf32>
    %64 = vector.shape_cast %61 : vector<8x128xf32> to vector<1x8x128xf32>
    tpu.vector_store %arg5[%c0_34, %c0_35, %c0_36], %64 {strides = array<i32>} : memref<2x8x128xf32, #tpu.memory_space<vmem>>, vector<1x8x128xf32>,
    %c1 = arith.constant 1 : index
    %c0_37 = arith.constant 0 : index
    %c0_38 = arith.constant 0 : index
    %65 = vector.load %arg2[%c1, %c0_37, %c0_38] : memref<2x96x32xbf16, #tpu.memory_space<vmem>>, vector<1x4x32xbf16>
    %66 = vector.shape_cast %65 : vector<1x4x32xbf16> to vector<4x32xbf16>
    %c1_39 = arith.constant 1 : index
    %c8_40 = arith.constant 8 : index
    %c0_41 = arith.constant 0 : index
    %67 = vector.load %arg2[%c1_39, %c8_40, %c0_41] : memref<2x96x32xbf16, #tpu.memory_space<vmem>>, vector<1x32x32xbf16>
    %68 = vector.shape_cast %67 : vector<1x32x32xbf16> to vector<32x32xbf16>
    %c1_42 = arith.constant 1 : index
    %c40_43 = arith.constant 40 : index
    %c0_44 = arith.constant 0 : index
    %69 = vector.load %arg2[%c1_42, %c40_43, %c0_44] : memref<2x96x32xbf16, #tpu.memory_space<vmem>>, vector<1x16x32xbf16>
    %70 = vector.shape_cast %69 : vector<1x16x32xbf16> to vector<16x32xbf16>
    %c1_45 = arith.constant 1 : index
    %c56_46 = arith.constant 56 : index
    %c0_47 = arith.constant 0 : index
    %71 = vector.load %arg2[%c1_45, %c56_46, %c0_47] : memref<2x96x32xbf16, #tpu.memory_space<vmem>>, vector<1x8x32xbf16>
    %72 = vector.shape_cast %71 : vector<1x8x32xbf16> to vector<8x32xbf16>
    %c1_48 = arith.constant 1 : index
    %c64_49 = arith.constant 64 : index
    %c0_50 = arith.constant 0 : index
    %73 = vector.load %arg2[%c1_48, %c64_49, %c0_50] : memref<2x96x32xbf16, #tpu.memory_space<vmem>>, vector<1x32x32xbf16>
    %74 = vector.shape_cast %73 : vector<1x32x32xbf16> to vector<32x32xbf16>
    %cst_51 = arith.constant dense<0.000000e+00> : vector<4x32xf32>
    %75 = tpu.matmul %66, %68, %cst_51 {dimension_numbers = #tpu.dot_dimension_numbers<[1], [0], [0], [1], [0, 0, 1, 1], [], []>} : vector<4x32xbf16>, vector<32x32xbf16>, vector<4x32xf32> -> vector<4x32xf32>
    %76 = arith.truncf %75 : vector<4x32xf32> to vector<4x32xbf16>
    %cst_52 = arith.constant dense<0.000000e+00> : vector<4x128xf32>
    %77 = tpu.matmul %76, %0, %cst_52 {dimension_numbers = #tpu.dot_dimension_numbers<[1], [0], [0], [1], [0, 0, 1, 1], [], []>} : vector<4x32xbf16>, vector<32x128xbf16>, vector<4x128xf32> -> vector<4x128xf32>
    %78 = math.tanh %77 : vector<4x128xf32>
    %c1_53 = arith.constant 1 : index
    %c0_54 = arith.constant 0 : index
    %c0_55 = arith.constant 0 : index
    %79 = vector.load %arg4[%c1_53, %c0_54, %c0_55] : memref<2x4x128xf32, #tpu.memory_space<vmem>>, vector<1x4x128xf32>
    %80 = vector.shape_cast %79 : vector<1x4x128xf32> to vector<4x128xf32>
    %81 = vector.shape_cast %78 : vector<4x128xf32> to vector<1x4x128xf32>
    tpu.vector_store %arg4[%c1_53, %c0_54, %c0_55], %81 {strides = array<i32>} : memref<2x4x128xf32, #tpu.memory_space<vmem>>, vector<1x4x128xf32>,
    %c1_56 = arith.constant 1 : index
    %82 = memref.load %arg0[%c1_56] : memref<2xi32, #tpu.memory_space<smem>>
    %c0_i32_57 = arith.constant 0 : i32
    %c3_i32_58 = arith.constant 3 : i32
    %83 = arith.maxsi %c0_i32_57, %82 : i32
    %84 = arith.minsi %c3_i32_58, %83 : i32
    %c1_59 = arith.constant 1 : index
    %85 = memref.load %arg1[%c1_59] : memref<2xi32, #tpu.memory_space<smem>>
    %c0_i32_60 = arith.constant 0 : i32
    %c3_i32_61 = arith.constant 3 : i32
    %86 = arith.maxsi %c0_i32_60, %85 : i32
    %87 = arith.minsi %c3_i32_61, %86 : i32
    %c1_62 = arith.constant 1 : index
    %88 = arith.index_cast %84 : i32 to index
    %c0_63 = arith.constant 0 : index
    %89 = vector.load %arg4[%c1_62, %88, %c0_63] : memref<2x4x128xf32, #tpu.memory_space<vmem>>, vector<1x1x128xf32>
    %90 = vector.shape_cast %89 : vector<1x1x128xf32> to vector<1x128xf32>
    %91 = vector.extract_strided_slice %90 {offsets = [0, 0], sizes = [1, 32], strides = [1, 1]} : vector<1x128xf32> to vector<1x32xf32>
    %c1_64 = arith.constant 1 : index
    %92 = arith.index_cast %87 : i32 to index
    %c0_65 = arith.constant 0 : index
    %93 = vector.load %arg4[%c1_64, %92, %c0_65] : memref<2x4x128xf32, #tpu.memory_space<vmem>>, vector<1x1x128xf32>
    %94 = vector.shape_cast %93 : vector<1x1x128xf32> to vector<1x128xf32>
    %95 = vector.extract_strided_slice %94 {offsets = [0, 0], sizes = [1, 32], strides = [1, 1]} : vector<1x128xf32> to vector<1x32xf32>
    %96 = arith.extf %72 : vector<8x32xbf16> to vector<8x32xf32>
    %97 = vector.broadcast %91 : vector<1x32xf32> to vector<8x32xf32>
    %98 = arith.addf %96, %97 : vector<8x32xf32>
    %99 = vector.broadcast %95 : vector<1x32xf32> to vector<8x32xf32>
    %100 = arith.addf %98, %99 : vector<8x32xf32>
    %101 = arith.truncf %100 : vector<8x32xf32> to vector<8x32xbf16>
    %cst_66 = arith.constant dense<0.000000e+00> : vector<8x32xf32>
    %102 = tpu.matmul %101, %1, %cst_66 {dimension_numbers = #tpu.dot_dimension_numbers<[1], [0], [0], [1], [0, 0, 1, 1], [], []>} : vector<8x32xbf16>, vector<32x32xbf16>, vector<8x32xf32> -> vector<8x32xf32>
    %103 = arith.truncf %102 : vector<8x32xf32> to vector<8x32xbf16>
    %cst_67 = arith.constant dense<0.000000e+00> : vector<8x32xf32>
    %104 = tpu.matmul %103, %74, %cst_67 {dimension_numbers = #tpu.dot_dimension_numbers<[1], [0], [0], [1], [0, 0, 1, 1], [], []>} : vector<8x32xbf16>, vector<32x32xbf16>, vector<8x32xf32> -> vector<8x32xf32>
    %105 = vector.extract_strided_slice %104 {offsets = [0, 0], sizes = [8, 16], strides = [1, 1]} : vector<8x32xf32> to vector<8x16xf32>
    %cst_68 = arith.constant 0.176776692 : f32
    %106 = vector.broadcast %cst_68 : f32 to vector<8x16xf32>
    %107 = arith.mulf %105, %106 : vector<8x16xf32>
    %cst_69 = arith.constant dense<0xFF800000> : vector<8xf32>
    %108 = vector.multi_reduction <maximumf>, %107, %cst_69 [1] : vector<8x16xf32> to vector<8xf32>
    %109 = vector.shape_cast %108 : vector<8xf32> to vector<8x1xf32>
    %110 = vector.broadcast %109 : vector<8x1xf32> to vector<8x16xf32>
    %111 = arith.subf %107, %110 : vector<8x16xf32>
    %112 = math.exp %111 : vector<8x16xf32>
    %cst_70 = arith.constant dense<0.000000e+00> : vector<8xf32>
    %113 = vector.multi_reduction <add>, %112, %cst_70 [1] : vector<8x16xf32> to vector<8xf32>
    %114 = vector.shape_cast %113 : vector<8xf32> to vector<8x1xf32>
    %115 = tpu.reciprocal %114 {approx = true} : vector<8x1xf32> -> vector<8x1xf32>
    %116 = vector.broadcast %115 : vector<8x1xf32> to vector<8x16xf32>
    %117 = arith.mulf %112, %116 : vector<8x16xf32>
    %118 = arith.truncf %117 : vector<8x16xf32> to vector<8x16xbf16>
    %cst_71 = arith.constant dense<0.000000e+00> : vector<8x32xf32>
    %119 = tpu.matmul %118, %70, %cst_71 {dimension_numbers = #tpu.dot_dimension_numbers<[1], [0], [0], [1], [0, 0, 1, 1], [], []>} : vector<8x16xbf16>, vector<16x32xbf16>, vector<8x32xf32> -> vector<8x32xf32>
    %120 = arith.addf %100, %119 : vector<8x32xf32>
    %121 = math.tanh %120 : vector<8x32xf32>
    %122 = arith.truncf %121 : vector<8x32xf32> to vector<8x32xbf16>
    %cst_72 = arith.constant dense<0.000000e+00> : vector<8x128xf32>
    %123 = tpu.matmul %122, %2, %cst_72 {dimension_numbers = #tpu.dot_dimension_numbers<[1], [0], [0], [1], [0, 0, 1, 1], [], []>} : vector<8x32xbf16>, vector<32x128xbf16>, vector<8x128xf32> -> vector<8x128xf32>
    %c1_73 = arith.constant 1 : index
    %c0_74 = arith.constant 0 : index
    %c0_75 = arith.constant 0 : index
    %124 = vector.load %arg5[%c1_73, %c0_74, %c0_75] : memref<2x8x128xf32, #tpu.memory_space<vmem>>, vector<1x8x128xf32>
    %125 = vector.shape_cast %124 : vector<1x8x128xf32> to vector<8x128xf32>
    %126 = vector.shape_cast %123 : vector<8x128xf32> to vector<1x8x128xf32>
    tpu.vector_store %arg5[%c1_73, %c0_74, %c0_75], %126 {strides = array<i32>} : memref<2x8x128xf32, #tpu.memory_space<vmem>>, vector<1x8x128xf32>,
    return
  }
}

</mosaic_0001>

<llo_original>
// kernel: asrgmpc_forward.1
$region0: #{asrgmpc_forward.1}
  #allocation0 [shape = 'u32[]', space=smem, size = 0x4, offset = 0x4, fixed_abs, tag = 'smem constant byte address 0x4 - core index']
  #allocation1 [shape = 'u32[144,128]{1,0:T(1,128)}', space=vmem, size = 0x12000, scoped, tag = 'internal scratch']
  %s0 = inlined_call_operand.vmem [shape: s32[2], index: 0, kind: input, shape index: {}]
  %s1 = inlined_call_operand.vmem [shape: s32[2], index: 1, kind: input, shape index: {}]
  %s2 = inlined_call_operand.vmem [shape: bf16[2,96,32], index: 2, kind: input, shape index: {}]
  %s3 = inlined_call_operand.vmem [shape: bf16[96,128], index: 3, kind: input, shape index: {}]
  %s4 = inlined_call_operand.vmem [shape: f32[2,4,128], index: 4, kind: output, shape index: {0}]
  %s5 = inlined_call_operand.hbm [shape: f32[2,8,128], index: 5, kind: output, shape index: {1}]
  %6 = xla_tuple %s4, %s5
  %s7 = sld [smem:[#allocation0]]
  $region42: #{asrgmpc_forward.1} parent=0
    _
  %s9 = ssub.s32 1, %s7
  %s10 = scalar_select 0, %s9, %s7
  $region1: #{asrgmpc_forward.1} parent=0
    #allocation2 [shape = 'u8[512]{0}', space=smem, size = 0x200, scoped, tag = 'input window, operand 0, single buffered']
    #allocation3 [shape = 's32[1]{0}', space=sflag, size = 0x4, scoped, tag = 'scoped memory for asrgmpc_forward.1']
    #allocation4 [shape = 's32[1]{0}', space=sflag, size = 0x4, scoped, tag = 'scoped memory for asrgmpc_forward.1']
    #allocation5 [shape = 'u8[512]{0}', space=smem, size = 0x200, scoped, tag = 'input window, operand 1, single buffered']
    #allocation6 [shape = 's32[1]{0}', space=sflag, size = 0x4, scoped, tag = 'scoped memory for asrgmpc_forward.1']
    #allocation7 [shape = 'u8[8192]{0}', space=vmem, size = 0x2000, scoped, tag = 'output window, operand 1, single buffered']
    %11 = vsyncpa [#allocation4], 0
    %12 = vsyncpa [#allocation6], 0
    %13 = vsyncpa [#allocation3], 0
    // Predicated region
    $region2: #{asrgmpc_forward.1} parent=1 // pred_check
      _
    $region3: #{asrgmpc_forward.1} parent=1 // pred_check_branch
      %15 = sbr.rel (0) target = $region5
    $region4: #{asrgmpc_forward.1} parent=1 // pred_region
      %s17 = ssub.s32 16, 16
      %18 = vsyncadd [#allocation4], %s17
      %s20 = sshll.u32 %s0, 4
      %s21 = int_to_ptr.vmem [resolvable:$true] %s20
      %23 = dma.vmem_to_smem %s21, 16, [#allocation2], [#allocation4]
    $region5: #{asrgmpc_forward.1} parent=1 // pred_fallthru
      _
    // Predicated region
    $region6: #{asrgmpc_forward.1} parent=1 // pred_check
      _
    $region7: #{asrgmpc_forward.1} parent=1 // pred_check_branch
      %25 = sbr.rel (0) target = $region9
    $region8: #{asrgmpc_forward.1} parent=1 // pred_region
      %s27 = ssub.s32 16, 16
      %28 = vsyncadd [#allocation6], %s27
      %s30 = sshll.u32 %s1, 4
      %s31 = int_to_ptr.vmem [resolvable:$true] %s30
      %33 = dma.vmem_to_smem %s31, 16, [#allocation5], [#allocation6]
    $region9: #{asrgmpc_forward.1} parent=1 // pred_fallthru
      _
    // Predicated region
    $region10: #{asrgmpc_forward.1} parent=1 // pred_check
      _
    $region11: #{asrgmpc_forward.1} parent=1 // pred_check_branch
      %35 = sbr.rel (0) target = $region13
    $region12: #{asrgmpc_forward.1} parent=1 // pred_region
      _
    $region13: #{asrgmpc_forward.1} parent=1 // pred_fallthru
      _
    // Predicated region
    $region14: #{asrgmpc_forward.1} parent=1 // pred_check
      _
    $region15: #{asrgmpc_forward.1} parent=1 // pred_check_branch
      %37 = sbr.rel (0) target = $region17
    $region16: #{asrgmpc_forward.1} parent=1 // pred_region
      _
    $region17: #{asrgmpc_forward.1} parent=1 // pred_fallthru
      _
    // Predicated region
    $region18: #{asrgmpc_forward.1} parent=1 // pred_check
      _
    $region19: #{asrgmpc_forward.1} parent=1 // pred_check_branch
      %39 = sbr.rel (0) target = $region21
    $region20: #{asrgmpc_forward.1} parent=1 // pred_region
      %40 = dma.done [#allocation4], 16
    $region21: #{asrgmpc_forward.1} parent=1 // pred_fallthru
      _
    // Predicated region
    $region22: #{asrgmpc_forward.1} parent=1 // pred_check
      _
    $region23: #{asrgmpc_forward.1} parent=1 // pred_check_branch
      %42 = sbr.rel (0) target = $region25
    $region24: #{asrgmpc_forward.1} parent=1 // pred_region
      %43 = dma.done [#allocation6], 16
    $region25: #{asrgmpc_forward.1} parent=1 // pred_fallthru
      _
    %44 = sfence
    %v46 = vld [vmem:[%s3] sm:$0xf]
    %v47 = vld [vmem:[%s3 + $0x4] sm:$0xf]
    %v48 = vld [vmem:[%s3 + $0x8] sm:$0xf]
    %v49 = vld [vmem:[%s3 + $0xc] sm:$0xf]
    %v50 = vld [vmem:[%s3 + $0x10] sm:$0xf]
    %v51 = vld [vmem:[%s3 + $0x14] sm:$0xf]
    %v52 = vld [vmem:[%s3 + $0x18] sm:$0xf]
    %v53 = vld [vmem:[%s3 + $0x1c] sm:$0xf]
    %v54 = vld [vmem:[%s3 + $0x20] sm:$0xf]
    %v55 = vld [vmem:[%s3 + $0x24] sm:$0xf]
    %v56 = vld [vmem:[%s3 + $0x28] sm:$0xf]
    %v57 = vld [vmem:[%s3 + $0x2c] sm:$0xf]
    %v58 = vld [vmem:[%s2] sm:$0x3]
    %v59 = vld [vmem:[%s2 + $0x4] sm:$0xf]
    %v60 = vld [vmem:[%s2 + $0x8] sm:$0xf]
    %v61 = vld [vmem:[%s2 + $0xc] sm:$0xf]
    %v62 = vld [vmem:[%s2 + $0x10] sm:$0xf]
    %v63 = vld [vmem:[%s2 + $0x14] sm:$0xf]
    %v64 = vld [vmem:[%s2 + $0x18] sm:$0xf]
    %v65 = vld [vmem:[%s2 + $0x1c] sm:$0xf]
    %v66 = vld [vmem:[%s2 + $0x20] sm:$0xf]
    %v67 = vld [vmem:[%s2 + $0x24] sm:$0xf]
    %v68 = vld [vmem:[%s2 + $0x28] sm:$0xf]
    %v69 = vld [vmem:[%s2 + $0x2c] sm:$0xf]
    %v74 = vunpack.c.l.b16 %v59
    %v75 = vunpack.c.l.b16 %v60
    %v76 = vunpack.c.l.b16 %v61
    %v77 = vunpack.c.l.b16 %v62
    %v78 = vpack.c.b16 %v75, %v74
    %v79 = vpack.c.b16 %v77, %v76
    %vm82 = vcmask 261120
    %v84 = vsel %vm82, %v58, 0
    %86 = vmatprep.subr.bf16.mxu0 0
    %87 = vmatpush1.bf16.msra.mxu0 %v78
    %88 = vmatprep.subr.bf16.mxu0 0
    %89 = vmatpush1.bf16.msra.mxu0 %v79
    %90 = vmatprep.subr.bf16.mxu0 0
    %91 = vmatpush1.bf16.msra.mxu0 0
    %92 = vmatprep.subr.bf16.mxu0 0
    %93 = vmatpush1.bf16.msra.mxu0 0
    %94 = vmatprep.subr.bf16.mxu0 0
    %95 = vmatpush1.bf16.msra.mxu0 0
    %96 = vmatprep.subr.bf16.mxu0 0
    %97 = vmatpush1.bf16.msra.mxu0 0
    %98 = vmatprep.subr.bf16.mxu0 0
    %99 = vmatpush1.bf16.msra.mxu0 0
    %100 = vmatprep.subr.bf16.mxu0 0
    %101 = vmatpush1.bf16.msra.mxu0 0
    %102 = vmatprep.subr.bf16.mxu0 0
    %103 = vmatpush1.bf16.msra.mxu0 0
    %104 = vmatprep.subr.bf16.mxu0 0
    %105 = vmatpush1.bf16.msra.mxu0 0
    %106 = vmatprep.subr.bf16.mxu0 0
    %107 = vmatpush1.bf16.msra.mxu0 0
    %108 = vmatprep.subr.bf16.mxu0 0
    %109 = vmatpush1.bf16.msra.mxu0 0
    %110 = vmatprep.subr.bf16.mxu0 0
    %111 = vmatpush1.bf16.msra.mxu0 0
    %112 = vmatprep.subr.bf16.mxu0 0
    %113 = vmatpush1.bf16.msra.mxu0 0
    %114 = vmatprep.subr.bf16.mxu0 0
    %115 = vmatpush1.bf16.msra.mxu0 0
    %116 = vmatprep.subr.bf16.mxu0 0
    %117 = vmatpush1.bf16.msra.mxu0 0
    %118 = vmatprep.mubr.bf16.mxu0 0
    %119 = vmatmul.mubr.bf16.gmra.mrb[0].mxu0 %v84
    %v120 = vpop.f32.mrb[0].mxu0
    %v121 = vadd.f32 0.0, %v120
    %v122 = vpop.f32.mrb[0].mxu0
    %v123 = vpop.f32.mrb[0].mxu0
    %v124 = vpop.f32.mrb[0].mxu0
    %125 = vdwg.mxu0
    %v126 = vpack.c.bf16 %v121, %v121
    %v131 = vunpack.c.l.b16 %v46
    %v132 = vunpack.c.l.b16 %v47
    %v133 = vunpack.c.l.b16 %v48
    %v134 = vunpack.c.l.b16 %v49
    %v135 = vpack.c.b16 %v132, %v131
    %v136 = vpack.c.b16 %v134, %v133
    %v140 = vsel %vm82, %v126, 0
    %142 = vmatprep.subr.bf16.mxu0 0
    %143 = vmatpush1.bf16.msra.mxu0 %v135
    %144 = vmatprep.subr.bf16.mxu0 0
    %145 = vmatpush1.bf16.msra.mxu0 %v136
    %146 = vmatprep.subr.bf16.mxu0 0
    %147 = vmatpush1.bf16.msra.mxu0 0
    %148 = vmatprep.subr.bf16.mxu0 0
    %149 = vmatpush1.bf16.msra.mxu0 0
    %150 = vmatprep.subr.bf16.mxu0 0
    %151 = vmatpush1.bf16.msra.mxu0 0
    %152 = vmatprep.subr.bf16.mxu0 0
    %153 = vmatpush1.bf16.msra.mxu0 0
    %154 = vmatprep.subr.bf16.mxu0 0
    %155 = vmatpush1.bf16.msra.mxu0 0
    %156 = vmatprep.subr.bf16.mxu0 0
    %157 = vmatpush1.bf16.msra.mxu0 0
    %158 = vmatprep.subr.bf16.mxu0 0
    %159 = vmatpush1.bf16.msra.mxu0 0
    %160 = vmatprep.subr.bf16.mxu0 0
    %161 = vmatpush1.bf16.msra.mxu0 0
    %162 = vmatprep.subr.bf16.mxu0 0
    %163 = vmatpush1.bf16.msra.mxu0 0
    %164 = vmatprep.subr.bf16.mxu0 0
    %165 = vmatpush1.bf16.msra.mxu0 0
    %166 = vmatprep.subr.bf16.mxu0 0
    %167 = vmatpush1.bf16.msra.mxu0 0
    %168 = vmatprep.subr.bf16.mxu0 0
    %169 = vmatpush1.bf16.msra.mxu0 0
    %170 = vmatprep.subr.bf16.mxu0 0
    %171 = vmatpush1.bf16.msra.mxu0 0
    %172 = vmatprep.subr.bf16.mxu0 0
    %173 = vmatpush1.bf16.msra.mxu0 0
    %174 = vmatprep.mubr.bf16.mxu0 0
    %175 = vmatmul.mubr.bf16.gmra.mrb[0].mxu0 %v140
    %v176 = vpop.f32.mrb[0].mxu0
    %v177 = vadd.f32 0.0, %v176
    %v178 = vpop.f32.mrb[0].mxu0
    %v179 = vpop.f32.mrb[0].mxu0
    %v180 = vpop.f32.mrb[0].mxu0
    %181 = vdwg.mxu0
    %v182 = vtanh.pop %v177
    %183 = vst [vmem:[%s4] sm:$0xf] %v182
    %s184 = sld [smem:[#allocation2]]
    %p185 = scmp.gt.s32.totalorder %s184, 0
    %s186 = scalar_select %p185, %s184, 0
    %p187 = scmp.lt.s32.totalorder %s186, 3
    %s188 = scalar_select %p187, %s186, 3
    %s189 = sld [smem:[#allocation5]]
    %p190 = scmp.gt.s32.totalorder %s189, 0
    %s191 = scalar_select %p190, %s189, 0
    %p192 = scmp.lt.s32.totalorder %s191, 3
    %s193 = scalar_select %p192, %s191, 3
    %s194 = scalar_lea.vmem %s4, %s188
    %v195 = vld [vmem:[%s194] sm:$0x1]
    %s196 = scalar_lea.vmem %s4, %s193
    %v197 = vld [vmem:[%s196] sm:$0x1]
    %v198 = vunpack.c.l.bf16 %v65
    %v199 = vlaneseq
    %v200 = vshrl.u32 %v199, 7
    %v201 = vsub.s32 0, %v200
    %v202 = vrot.slane %v195, %v201
    %v203 = vadd.f32 %v198, %v202
    %v204 = vlaneseq
    %v205 = vshrl.u32 %v204, 7
    %v206 = vsub.s32 0, %v205
    %v207 = vrot.slane %v197, %v206
    %v208 = vadd.f32 %v203, %v207
    %v209 = vpack.c.bf16 %v208, %v208
    %v214 = vunpack.c.l.b16 %v50
    %v215 = vunpack.c.l.b16 %v51
    %v216 = vunpack.c.l.b16 %v52
    %v217 = vunpack.c.l.b16 %v53
    %v218 = vpack.c.b16 %v215, %v214
    %v219 = vpack.c.b16 %v217, %v216
    %v223 = vsel %vm82, %v209, 0
    %225 = vmatprep.subr.bf16.mxu0 0
    %226 = vmatpush1.bf16.msra.mxu0 %v218
    %227 = vmatprep.subr.bf16.mxu0 0
    %228 = vmatpush1.bf16.msra.mxu0 %v219
    %229 = vmatprep.subr.bf16.mxu0 0
    %230 = vmatpush1.bf16.msra.mxu0 0
    %231 = vmatprep.subr.bf16.mxu0 0
    %232 = vmatpush1.bf16.msra.mxu0 0
    %233 = vmatprep.subr.bf16.mxu0 0
    %234 = vmatpush1.bf16.msra.mxu0 0
    %235 = vmatprep.subr.bf16.mxu0 0
    %236 = vmatpush1.bf16.msra.mxu0 0
    %237 = vmatprep.subr.bf16.mxu0 0
    %238 = vmatpush1.bf16.msra.mxu0 0
    %239 = vmatprep.subr.bf16.mxu0 0
    %240 = vmatpush1.bf16.msra.mxu0 0
    %241 = vmatprep.subr.bf16.mxu0 0
    %242 = vmatpush1.bf16.msra.mxu0 0
    %243 = vmatprep.subr.bf16.mxu0 0
    %244 = vmatpush1.bf16.msra.mxu0 0
    %245 = vmatprep.subr.bf16.mxu0 0
    %246 = vmatpush1.bf16.msra.mxu0 0
    %247 = vmatprep.subr.bf16.mxu0 0
    %248 = vmatpush1.bf16.msra.mxu0 0
    %249 = vmatprep.subr.bf16.mxu0 0
    %250 = vmatpush1.bf16.msra.mxu0 0
    %251 = vmatprep.subr.bf16.mxu0 0
    %252 = vmatpush1.bf16.msra.mxu0 0
    %253 = vmatprep.subr.bf16.mxu0 0
    %254 = vmatpush1.bf16.msra.mxu0 0
    %255 = vmatprep.subr.bf16.mxu0 0
    %256 = vmatpush1.bf16.msra.mxu0 0
    %257 = vmatprep.mubr.bf16.mxu0 0
    %258 = vmatmul.mubr.bf16.gmra.mrb[0].mxu0 %v223
    %v259 = vpop.f32.mrb[0].mxu0
    %v260 = vadd.f32 0.0, %v259
    %v261 = vpop.f32.mrb[0].mxu0
    %v262 = vpop.f32.mrb[0].mxu0
    %v263 = vpop.f32.mrb[0].mxu0
    %264 = vdwg.mxu0
    %v265 = vpack.c.bf16 %v260, %v260
    %v270 = vunpack.c.l.b16 %v66
    %v271 = vunpack.c.l.b16 %v67
    %v272 = vunpack.c.l.b16 %v68
    %v273 = vunpack.c.l.b16 %v69
    %v274 = vpack.c.b16 %v271, %v270
    %v275 = vpack.c.b16 %v273, %v272
    %v279 = vsel %vm82, %v265, 0
    %281 = vmatprep.subr.bf16.mxu0 0
    %282 = vmatpush1.bf16.msra.mxu0 %v274
    %283 = vmatprep.subr.bf16.mxu0 0
    %284 = vmatpush1.bf16.msra.mxu0 %v275
    %285 = vmatprep.subr.bf16.mxu0 0
    %286 = vmatpush1.bf16.msra.mxu0 0
    %287 = vmatprep.subr.bf16.mxu0 0
    %288 = vmatpush1.bf16.msra.mxu0 0
    %289 = vmatprep.subr.bf16.mxu0 0
    %290 = vmatpush1.bf16.msra.mxu0 0
    %291 = vmatprep.subr.bf16.mxu0 0
    %292 = vmatpush1.bf16.msra.mxu0 0
    %293 = vmatprep.subr.bf16.mxu0 0
    %294 = vmatpush1.bf16.msra.mxu0 0
    %295 = vmatprep.subr.bf16.mxu0 0
    %296 = vmatpush1.bf16.msra.mxu0 0
    %297 = vmatprep.subr.bf16.mxu0 0
    %298 = vmatpush1.bf16.msra.mxu0 0
    %299 = vmatprep.subr.bf16.mxu0 0
    %300 = vmatpush1.bf16.msra.mxu0 0
    %301 = vmatprep.subr.bf16.mxu0 0
    %302 = vmatpush1.bf16.msra.mxu0 0
    %303 = vmatprep.subr.bf16.mxu0 0
    %304 = vmatpush1.bf16.msra.mxu0 0
    %305 = vmatprep.subr.bf16.mxu0 0
    %306 = vmatpush1.bf16.msra.mxu0 0
    %307 = vmatprep.subr.bf16.mxu0 0
    %308 = vmatpush1.bf16.msra.mxu0 0
    %309 = vmatprep.subr.bf16.mxu0 0
    %310 = vmatpush1.bf16.msra.mxu0 0
    %311 = vmatprep.subr.bf16.mxu0 0
    %312 = vmatpush1.bf16.msra.mxu0 0
    %313 = vmatprep.mubr.bf16.mxu0 0
    %314 = vmatmul.mubr.bf16.gmra.mrb[0].mxu0 %v279
    %v315 = vpop.f32.mrb[0].mxu0
    %v316 = vadd.f32 0.0, %v315
    %v317 = vpop.f32.mrb[0].mxu0
    %v318 = vpop.f32.mrb[0].mxu0
    %v319 = vpop.f32.mrb[0].mxu0
    %320 = vdwg.mxu0
    %v321 = vmul.f32 %v316, 0.17677669
    %vm322 = vcmask 130048
    %v323 = vsel %vm322, %v321, -inf
    %324 = vmax.xlane.f32.xlu0 %v323
    %v325 = vpop.xlane.xlu0 %324
    %v326 = vsub.f32 %v321, %v325
    %v327 = vmul.f32 %v326, 1.442695
    %v328 = vpow.pop %v327
    %v329 = vsel %vm322, %v328, 0.0
    %330 = vadd.xlane.f32.xlu0 %v329
    %v331 = vpop.xlane.xlu0 %330
    %v332 = vrcp.pop %v331
    %v333 = vmul.f32 %v328, %v332
    %v334 = vpack.c.bf16 %v333, %v333
    %v337 = vunpack.c.l.b16 %v63
    %v338 = vunpack.c.l.b16 %v64
    %v339 = vpack.c.b16 %v338, %v337
    %v342 = vsel %vm322, %v334, 0
    %344 = vmatprep.subr.bf16.mxu0 0
    %345 = vmatpush1.bf16.msra.mxu0 %v339
    %346 = vmatprep.subr.bf16.mxu0 0
    %347 = vmatpush1.bf16.msra.mxu0 0
    %348 = vmatprep.subr.bf16.mxu0 0
    %349 = vmatpush1.bf16.msra.mxu0 0
    %350 = vmatprep.subr.bf16.mxu0 0
    %351 = vmatpush1.bf16.msra.mxu0 0
    %352 = vmatprep.subr.bf16.mxu0 0
    %353 = vmatpush1.bf16.msra.mxu0 0
    %354 = vmatprep.subr.bf16.mxu0 0
    %355 = vmatpush1.bf16.msra.mxu0 0
    %356 = vmatprep.subr.bf16.mxu0 0
    %357 = vmatpush1.bf16.msra.mxu0 0
    %358 = vmatprep.subr.bf16.mxu0 0
    %359 = vmatpush1.bf16.msra.mxu0 0
    %360 = vmatprep.subr.bf16.mxu0 0
    %361 = vmatpush1.bf16.msra.mxu0 0
    %362 = vmatprep.subr.bf16.mxu0 0
    %363 = vmatpush1.bf16.msra.mxu0 0
    %364 = vmatprep.subr.bf16.mxu0 0
    %365 = vmatpush1.bf16.msra.mxu0 0
    %366 = vmatprep.subr.bf16.mxu0 0
    %367 = vmatpush1.bf16.msra.mxu0 0
    %368 = vmatprep.subr.bf16.mxu0 0
    %369 = vmatpush1.bf16.msra.mxu0 0
    %370 = vmatprep.subr.bf16.mxu0 0
    %371 = vmatpush1.bf16.msra.mxu0 0
    %372 = vmatprep.subr.bf16.mxu0 0
    %373 = vmatpush1.bf16.msra.mxu0 0
    %374 = vmatprep.subr.bf16.mxu0 0
    %375 = vmatpush1.bf16.msra.mxu0 0
    %376 = vmatprep.mubr.bf16.mxu0 0
    %377 = vmatmul.mubr.bf16.gmra.mrb[0].mxu0 %v342
    %v378 = vpop.f32.mrb[0].mxu0
    %v379 = vadd.f32 0.0, %v378
    %v380 = vpop.f32.mrb[0].mxu0
    %v381 = vpop.f32.mrb[0].mxu0
    %v382 = vpop.f32.mrb[0].mxu0
    %383 = vdwg.mxu0
    %v384 = vadd.f32 %v208, %v379
    %v385 = vtanh.pop %v384
    %v386 = vpack.c.bf16 %v385, %v385
    %v391 = vunpack.c.l.b16 %v54
    %v392 = vunpack.c.l.b16 %v55
    %v393 = vunpack.c.l.b16 %v56
    %v394 = vunpack.c.l.b16 %v57
    %v395 = vpack.c.b16 %v392, %v391
    %v396 = vpack.c.b16 %v394, %v393
    %v400 = vsel %vm82, %v386, 0
    %402 = vmatprep.subr.bf16.mxu0 0
    %403 = vmatpush1.bf16.msra.mxu0 %v395
    %404 = vmatprep.subr.bf16.mxu0 0
    %405 = vmatpush1.bf16.msra.mxu0 %v396
    %406 = vmatprep.subr.bf16.mxu0 0
    %407 = vmatpush1.bf16.msra.mxu0 0
    %408 = vmatprep.subr.bf16.mxu0 0
    %409 = vmatpush1.bf16.msra.mxu0 0
    %410 = vmatprep.subr.bf16.mxu0 0
    %411 = vmatpush1.bf16.msra.mxu0 0
    %412 = vmatprep.subr.bf16.mxu0 0
    %413 = vmatpush1.bf16.msra.mxu0 0
    %414 = vmatprep.subr.bf16.mxu0 0
    %415 = vmatpush1.bf16.msra.mxu0 0
    %416 = vmatprep.subr.bf16.mxu0 0
    %417 = vmatpush1.bf16.msra.mxu0 0
    %418 = vmatprep.subr.bf16.mxu0 0
    %419 = vmatpush1.bf16.msra.mxu0 0
    %420 = vmatprep.subr.bf16.mxu0 0
    %421 = vmatpush1.bf16.msra.mxu0 0
    %422 = vmatprep.subr.bf16.mxu0 0
    %423 = vmatpush1.bf16.msra.mxu0 0
    %424 = vmatprep.subr.bf16.mxu0 0
    %425 = vmatpush1.bf16.msra.mxu0 0
    %426 = vmatprep.subr.bf16.mxu0 0
    %427 = vmatpush1.bf16.msra.mxu0 0
    %428 = vmatprep.subr.bf16.mxu0 0
    %429 = vmatpush1.bf16.msra.mxu0 0
    %430 = vmatprep.subr.bf16.mxu0 0
    %431 = vmatpush1.bf16.msra.mxu0 0
    %432 = vmatprep.subr.bf16.mxu0 0
    %433 = vmatpush1.bf16.msra.mxu0 0
    %434 = vmatprep.mubr.bf16.mxu0 0
    %435 = vmatmul.mubr.bf16.gmra.mrb[0].mxu0 %v400
    %v436 = vpop.f32.mrb[0].mxu0
    %v437 = vadd.f32 0.0, %v436
    %v438 = vpop.f32.mrb[0].mxu0
    %v439 = vpop.f32.mrb[0].mxu0
    %v440 = vpop.f32.mrb[0].mxu0
    %441 = vdwg.mxu0
    %442 = vst [vmem:[#allocation7] sm:$0xff] %v437
    %s443 = scalar_lea.vmem %s2, 48
    %v444 = vld [vmem:[%s443] sm:$0x3]
    %v445 = vld [vmem:[%s443 + $0x4] sm:$0xf]
    %v446 = vld [vmem:[%s443 + $0x8] sm:$0xf]
    %v447 = vld [vmem:[%s443 + $0xc] sm:$0xf]
    %v448 = vld [vmem:[%s443 + $0x10] sm:$0xf]
    %v449 = vld [vmem:[%s443 + $0x14] sm:$0xf]
    %v450 = vld [vmem:[%s443 + $0x18] sm:$0xf]
    %v451 = vld [vmem:[%s443 + $0x1c] sm:$0xf]
    %v452 = vld [vmem:[%s443 + $0x20] sm:$0xf]
    %v453 = vld [vmem:[%s443 + $0x24] sm:$0xf]
    %v454 = vld [vmem:[%s443 + $0x28] sm:$0xf]
    %v455 = vld [vmem:[%s443 + $0x2c] sm:$0xf]
    %v460 = vunpack.c.l.b16 %v445
    %v461 = vunpack.c.l.b16 %v446
    %v462 = vunpack.c.l.b16 %v447
    %v463 = vunpack.c.l.b16 %v448
    %v464 = vpack.c.b16 %v461, %v460
    %v465 = vpack.c.b16 %v463, %v462
    %v469 = vsel %vm82, %v444, 0
    %471 = vmatprep.subr.bf16.mxu0 0
    %472 = vmatpush1.bf16.msra.mxu0 %v464
    %473 = vmatprep.subr.bf16.mxu0 0
    %474 = vmatpush1.bf16.msra.mxu0 %v465
    %475 = vmatprep.subr.bf16.mxu0 0
    %476 = vmatpush1.bf16.msra.mxu0 0
    %477 = vmatprep.subr.bf16.mxu0 0
    %478 = vmatpush1.bf16.msra.mxu0 0
    %479 = vmatprep.subr.bf16.mxu0 0
    %480 = vmatpush1.bf16.msra.mxu0 0
    %481 = vmatprep.subr.bf16.mxu0 0
    %482 = vmatpush1.bf16.msra.mxu0 0
    %483 = vmatprep.subr.bf16.mxu0 0
    %484 = vmatpush1.bf16.msra.mxu0 0
    %485 = vmatprep.subr.bf16.mxu0 0
    %486 = vmatpush1.bf16.msra.mxu0 0
    %487 = vmatprep.subr.bf16.mxu0 0
    %488 = vmatpush1.bf16.msra.mxu0 0
    %489 = vmatprep.subr.bf16.mxu0 0
    %490 = vmatpush1.bf16.msra.mxu0 0
    %491 = vmatprep.subr.bf16.mxu0 0
    %492 = vmatpush1.bf16.msra.mxu0 0
    %493 = vmatprep.subr.bf16.mxu0 0
    %494 = vmatpush1.bf16.msra.mxu0 0
    %495 = vmatprep.subr.bf16.mxu0 0
    %496 = vmatpush1.bf16.msra.mxu0 0
    %497 = vmatprep.subr.bf16.mxu0 0
    %498 = vmatpush1.bf16.msra.mxu0 0
    %499 = vmatprep.subr.bf16.mxu0 0
    %500 = vmatpush1.bf16.msra.mxu0 0
    %501 = vmatprep.subr.bf16.mxu0 0
    %502 = vmatpush1.bf16.msra.mxu0 0
    %503 = vmatprep.mubr.bf16.mxu0 0
    %504 = vmatmul.mubr.bf16.gmra.mrb[0].mxu0 %v469
    %v505 = vpop.f32.mrb[0].mxu0
    %v506 = vadd.f32 0.0, %v505
    %v507 = vpop.f32.mrb[0].mxu0
    %v508 = vpop.f32.mrb[0].mxu0
    %v509 = vpop.f32.mrb[0].mxu0
    %510 = vdwg.mxu0
    %v511 = vpack.c.bf16 %v506, %v506
    %v513 = vsel %vm82, %v511, 0
    %515 = vmatprep.subr.bf16.mxu0 0
    %516 = vmatpush1.bf16.msra.mxu0 %v135
    %517 = vmatprep.subr.bf16.mxu0 0
    %518 = vmatpush1.bf16.msra.mxu0 %v136
    %519 = vmatprep.subr.bf16.mxu0 0
    %520 = vmatpush1.bf16.msra.mxu0 0
    %521 = vmatprep.subr.bf16.mxu0 0
    %522 = vmatpush1.bf16.msra.mxu0 0
    %523 = vmatprep.subr.bf16.mxu0 0
    %524 = vmatpush1.bf16.msra.mxu0 0
    %525 = vmatprep.subr.bf16.mxu0 0
    %526 = vmatpush1.bf16.msra.mxu0 0
    %527 = vmatprep.subr.bf16.mxu0 0
    %528 = vmatpush1.bf16.msra.mxu0 0
    %529 = vmatprep.subr.bf16.mxu0 0
    %530 = vmatpush1.bf16.msra.mxu0 0
    %531 = vmatprep.subr.bf16.mxu0 0
    %532 = vmatpush1.bf16.msra.mxu0 0
    %533 = vmatprep.subr.bf16.mxu0 0
    %534 = vmatpush1.bf16.msra.mxu0 0
    %535 = vmatprep.subr.bf16.mxu0 0
    %536 = vmatpush1.bf16.msra.mxu0 0
    %537 = vmatprep.subr.bf16.mxu0 0
    %538 = vmatpush1.bf16.msra.mxu0 0
    %539 = vmatprep.subr.bf16.mxu0 0
    %540 = vmatpush1.bf16.msra.mxu0 0
    %541 = vmatprep.subr.bf16.mxu0 0
    %542 = vmatpush1.bf16.msra.mxu0 0
    %543 = vmatprep.subr.bf16.mxu0 0
    %544 = vmatpush1.bf16.msra.mxu0 0
    %545 = vmatprep.subr.bf16.mxu0 0
    %546 = vmatpush1.bf16.msra.mxu0 0
    %547 = vmatprep.mubr.bf16.mxu0 0
    %548 = vmatmul.mubr.bf16.gmra.mrb[0].mxu0 %v513
    %v549 = vpop.f32.mrb[0].mxu0
    %v550 = vadd.f32 0.0, %v549
    %v551 = vpop.f32.mrb[0].mxu0
    %v552 = vpop.f32.mrb[0].mxu0
    %v553 = vpop.f32.mrb[0].mxu0
    %554 = vdwg.mxu0
    %v555 = vtanh.pop %v550
    %s556 = scalar_lea.vmem %s4, 4
    %557 = vst [vmem:[%s556] sm:$0xf] %v555
    %s558 = sld [smem:[#allocation2 + $0x1]]
    %p559 = scmp.gt.s32.totalorder %s558, 0
    %s560 = scalar_select %p559, %s558, 0
    %p561 = scmp.lt.s32.totalorder %s560, 3
    %s562 = scalar_select %p561, %s560, 3
    %s563 = sld [smem:[#allocation5 + $0x1]]
    %p564 = scmp.gt.s32.totalorder %s563, 0
    %s565 = scalar_select %p564, %s563, 0
    %p566 = scmp.lt.s32.totalorder %s565, 3
    %s567 = scalar_select %p566, %s565, 3
    %s568 = sadd.s32 %s562, 4
    %s569 = scalar_lea.vmem %s4, %s568
    %v570 = vld [vmem:[%s569] sm:$0x1]
    %s571 = sadd.s32 %s567, 4
    %s572 = scalar_lea.vmem %s4, %s571
    %v573 = vld [vmem:[%s572] sm:$0x1]
    %v574 = vunpack.c.l.bf16 %v451
    %v575 = vlaneseq
    %v576 = vshrl.u32 %v575, 7
    %v577 = vsub.s32 0, %v576
    %v578 = vrot.slane %v570, %v577
    %v579 = vadd.f32 %v574, %v578
    %v580 = vlaneseq
    %v581 = vshrl.u32 %v580, 7
    %v582 = vsub.s32 0, %v581
    %v583 = vrot.slane %v573, %v582
    %v584 = vadd.f32 %v579, %v583
    %v585 = vpack.c.bf16 %v584, %v584
    %v587 = vsel %vm82, %v585, 0
    %589 = vmatprep.subr.bf16.mxu0 0
    %590 = vmatpush1.bf16.msra.mxu0 %v218
    %591 = vmatprep.subr.bf16.mxu0 0
    %592 = vmatpush1.bf16.msra.mxu0 %v219
    %593 = vmatprep.subr.bf16.mxu0 0
    %594 = vmatpush1.bf16.msra.mxu0 0
    %595 = vmatprep.subr.bf16.mxu0 0
    %596 = vmatpush1.bf16.msra.mxu0 0
    %597 = vmatprep.subr.bf16.mxu0 0
    %598 = vmatpush1.bf16.msra.mxu0 0
    %599 = vmatprep.subr.bf16.mxu0 0
    %600 = vmatpush1.bf16.msra.mxu0 0
    %601 = vmatprep.subr.bf16.mxu0 0
    %602 = vmatpush1.bf16.msra.mxu0 0
    %603 = vmatprep.subr.bf16.mxu0 0
    %604 = vmatpush1.bf16.msra.mxu0 0
    %605 = vmatprep.subr.bf16.mxu0 0
    %606 = vmatpush1.bf16.msra.mxu0 0
    %607 = vmatprep.subr.bf16.mxu0 0
    %608 = vmatpush1.bf16.msra.mxu0 0
    %609 = vmatprep.subr.bf16.mxu0 0
    %610 = vmatpush1.bf16.msra.mxu0 0
    %611 = vmatprep.subr.bf16.mxu0 0
    %612 = vmatpush1.bf16.msra.mxu0 0
    %613 = vmatprep.subr.bf16.mxu0 0
    %614 = vmatpush1.bf16.msra.mxu0 0
    %615 = vmatprep.subr.bf16.mxu0 0
    %616 = vmatpush1.bf16.msra.mxu0 0
    %617 = vmatprep.subr.bf16.mxu0 0
    %618 = vmatpush1.bf16.msra.mxu0 0
    %619 = vmatprep.subr.bf16.mxu0 0
    %620 = vmatpush1.bf16.msra.mxu0 0
    %621 = vmatprep.mubr.bf16.mxu0 0
    %622 = vmatmul.mubr.bf16.gmra.mrb[0].mxu0 %v587
    %v623 = vpop.f32.mrb[0].mxu0
    %v624 = vadd.f32 0.0, %v623
    %v625 = vpop.f32.mrb[0].mxu0
    %v626 = vpop.f32.mrb[0].mxu0
    %v627 = vpop.f32.mrb[0].mxu0
    %628 = vdwg.mxu0
    %v629 = vpack.c.bf16 %v624, %v624
    %v634 = vunpack.c.l.b16 %v452
    %v635 = vunpack.c.l.b16 %v453
    %v636 = vunpack.c.l.b16 %v454
    %v637 = vunpack.c.l.b16 %v455
    %v638 = vpack.c.b16 %v635, %v634
    %v639 = vpack.c.b16 %v637, %v636
    %v643 = vsel %vm82, %v629, 0
    %645 = vmatprep.subr.bf16.mxu0 0
    %646 = vmatpush1.bf16.msra.mxu0 %v638
    %647 = vmatprep.subr.bf16.mxu0 0
    %648 = vmatpush1.bf16.msra.mxu0 %v639
    %649 = vmatprep.subr.bf16.mxu0 0
    %650 = vmatpush1.bf16.msra.mxu0 0
    %651 = vmatprep.subr.bf16.mxu0 0
    %652 = vmatpush1.bf16.msra.mxu0 0
    %653 = vmatprep.subr.bf16.mxu0 0
    %654 = vmatpush1.bf16.msra.mxu0 0
    %655 = vmatprep.subr.bf16.mxu0 0
    %656 = vmatpush1.bf16.msra.mxu0 0
    %657 = vmatprep.subr.bf16.mxu0 0
    %658 = vmatpush1.bf16.msra.mxu0 0
    %659 = vmatprep.subr.bf16.mxu0 0
    %660 = vmatpush1.bf16.msra.mxu0 0
    %661 = vmatprep.subr.bf16.mxu0 0
    %662 = vmatpush1.bf16.msra.mxu0 0
    %663 = vmatprep.subr.bf16.mxu0 0
    %664 = vmatpush1.bf16.msra.mxu0 0
    %665 = vmatprep.subr.bf16.mxu0 0
    %666 = vmatpush1.bf16.msra.mxu0 0
    %667 = vmatprep.subr.bf16.mxu0 0
    %668 = vmatpush1.bf16.msra.mxu0 0
    %669 = vmatprep.subr.bf16.mxu0 0
    %670 = vmatpush1.bf16.msra.mxu0 0
    %671 = vmatprep.subr.bf16.mxu0 0
    %672 = vmatpush1.bf16.msra.mxu0 0
    %673 = vmatprep.subr.bf16.mxu0 0
    %674 = vmatpush1.bf16.msra.mxu0 0
    %675 = vmatprep.subr.bf16.mxu0 0
    %676 = vmatpush1.bf16.msra.mxu0 0
    %677 = vmatprep.mubr.bf16.mxu0 0
    %678 = vmatmul.mubr.bf16.gmra.mrb[0].mxu0 %v643
    %v679 = vpop.f32.mrb[0].mxu0
    %v680 = vadd.f32 0.0, %v679
    %v681 = vpop.f32.mrb[0].mxu0
    %v682 = vpop.f32.mrb[0].mxu0
    %v683 = vpop.f32.mrb[0].mxu0
    %684 = vdwg.mxu0
    %v685 = vmul.f32 %v680, 0.17677669
    %v686 = vsel %vm322, %v685, -inf
    %687 = vmax.xlane.f32.xlu0 %v686
    %v688 = vpop.xlane.xlu0 %687
    %v689 = vsub.f32 %v685, %v688
    %v690 = vmul.f32 %v689, 1.442695
    %v691 = vpow.pop %v690
    %v692 = vsel %vm322, %v691, 0.0
    %693 = vadd.xlane.f32.xlu0 %v692
    %v694 = vpop.xlane.xlu0 %693
    %v695 = vrcp.pop %v694
    %v696 = vmul.f32 %v691, %v695
    %v697 = vpack.c.bf16 %v696, %v696
    %v700 = vunpack.c.l.b16 %v449
    %v701 = vunpack.c.l.b16 %v450
    %v702 = vpack.c.b16 %v701, %v700
    %v705 = vsel %vm322, %v697, 0
    %707 = vmatprep.subr.bf16.mxu0 0
    %708 = vmatpush1.bf16.msra.mxu0 %v702
    %709 = vmatprep.subr.bf16.mxu0 0
    %710 = vmatpush1.bf16.msra.mxu0 0
    %711 = vmatprep.subr.bf16.mxu0 0
    %712 = vmatpush1.bf16.msra.mxu0 0
    %713 = vmatprep.subr.bf16.mxu0 0
    %714 = vmatpush1.bf16.msra.mxu0 0
    %715 = vmatprep.subr.bf16.mxu0 0
    %716 = vmatpush1.bf16.msra.mxu0 0
    %717 = vmatprep.subr.bf16.mxu0 0
    %718 = vmatpush1.bf16.msra.mxu0 0
    %719 = vmatprep.subr.bf16.mxu0 0
    %720 = vmatpush1.bf16.msra.mxu0 0
    %721 = vmatprep.subr.bf16.mxu0 0
    %722 = vmatpush1.bf16.msra.mxu0 0
    %723 = vmatprep.subr.bf16.mxu0 0
    %724 = vmatpush1.bf16.msra.mxu0 0
    %725 = vmatprep.subr.bf16.mxu0 0
    %726 = vmatpush1.bf16.msra.mxu0 0
    %727 = vmatprep.subr.bf16.mxu0 0
    %728 = vmatpush1.bf16.msra.mxu0 0
    %729 = vmatprep.subr.bf16.mxu0 0
    %730 = vmatpush1.bf16.msra.mxu0 0
    %731 = vmatprep.subr.bf16.mxu0 0
    %732 = vmatpush1.bf16.msra.mxu0 0
    %733 = vmatprep.subr.bf16.mxu0 0
    %734 = vmatpush1.bf16.msra.mxu0 0
    %735 = vmatprep.subr.bf16.mxu0 0
    %736 = vmatpush1.bf16.msra.mxu0 0
    %737 = vmatprep.subr.bf16.mxu0 0
    %738 = vmatpush1.bf16.msra.mxu0 0
    %739 = vmatprep.mubr.bf16.mxu0 0
    %740 = vmatmul.mubr.bf16.gmra.mrb[0].mxu0 %v705
    %v741 = vpop.f32.mrb[0].mxu0
    %v742 = vadd.f32 0.0, %v741
    %v743 = vpop.f32.mrb[0].mxu0
    %v744 = vpop.f32.mrb[0].mxu0
    %v745 = vpop.f32.mrb[0].mxu0
    %746 = vdwg.mxu0
    %v747 = vadd.f32 %v584, %v742
    %v748 = vtanh.pop %v747
    %v749 = vpack.c.bf16 %v748, %v748
    %v751 = vsel %vm82, %v749, 0
    %753 = vmatprep.subr.bf16.mxu0 0
    %754 = vmatpush1.bf16.msra.mxu0 %v395
    %755 = vmatprep.subr.bf16.mxu0 0
    %756 = vmatpush1.bf16.msra.mxu0 %v396
    %757 = vmatprep.subr.bf16.mxu0 0
    %758 = vmatpush1.bf16.msra.mxu0 0
    %759 = vmatprep.subr.bf16.mxu0 0
    %760 = vmatpush1.bf16.msra.mxu0 0
    %761 = vmatprep.subr.bf16.mxu0 0
    %762 = vmatpush1.bf16.msra.mxu0 0
    %763 = vmatprep.subr.bf16.mxu0 0
    %764 = vmatpush1.bf16.msra.mxu0 0
    %765 = vmatprep.subr.bf16.mxu0 0
    %766 = vmatpush1.bf16.msra.mxu0 0
    %767 = vmatprep.subr.bf16.mxu0 0
    %768 = vmatpush1.bf16.msra.mxu0 0
    %769 = vmatprep.subr.bf16.mxu0 0
    %770 = vmatpush1.bf16.msra.mxu0 0
    %771 = vmatprep.subr.bf16.mxu0 0
    %772 = vmatpush1.bf16.msra.mxu0 0
    %773 = vmatprep.subr.bf16.mxu0 0
    %774 = vmatpush1.bf16.msra.mxu0 0
    %775 = vmatprep.subr.bf16.mxu0 0
    %776 = vmatpush1.bf16.msra.mxu0 0
    %777 = vmatprep.subr.bf16.mxu0 0
    %778 = vmatpush1.bf16.msra.mxu0 0
    %779 = vmatprep.subr.bf16.mxu0 0
    %780 = vmatpush1.bf16.msra.mxu0 0
    %781 = vmatprep.subr.bf16.mxu0 0
    %782 = vmatpush1.bf16.msra.mxu0 0
    %783 = vmatprep.subr.bf16.mxu0 0
    %784 = vmatpush1.bf16.msra.mxu0 0
    %785 = vmatprep.mubr.bf16.mxu0 0
    %786 = vmatmul.mubr.bf16.gmra.mrb[0].mxu0 %v751
    %v787 = vpop.f32.mrb[0].mxu0
    %v788 = vadd.f32 0.0, %v787
    %v789 = vpop.f32.mrb[0].mxu0
    %v790 = vpop.f32.mrb[0].mxu0
    %v791 = vpop.f32.mrb[0].mxu0
    %792 = vdwg.mxu0
    %s793 = scalar_lea.vmem [#allocation7], 8
    %794 = vst [vmem:[%s793] sm:$0xff] %v788
    // Predicated region
    $region26: #{asrgmpc_forward.1} parent=1 // pred_check
      _
    $region27: #{asrgmpc_forward.1} parent=1 // pred_check_branch
      %796 = sbr.rel (0) target = $region29
    $region28: #{asrgmpc_forward.1} parent=1 // pred_region
      _
    $region29: #{asrgmpc_forward.1} parent=1 // pred_fallthru
      _
    // Predicated region
    $region30: #{asrgmpc_forward.1} parent=1 // pred_check
      _
    $region31: #{asrgmpc_forward.1} parent=1 // pred_check_branch
      %798 = sbr.rel (0) target = $region33
    $region32: #{asrgmpc_forward.1} parent=1 // pred_region
      %s800 = ssub.s32 256, 256
      %801 = vsyncadd [#allocation3], %s800
      %s802 = sshll.u32 [#allocation7], 4
      %s803 = int_to_ptr.vmem [resolvable:$true] %s802
      %808 = dma.vmem_to_hbm [thread:$0]  %s803, 256, %s5, [#allocation3], 128, 128, 8
    $region33: #{asrgmpc_forward.1} parent=1 // pred_fallthru
      _
    // Predicated region
    $region34: #{asrgmpc_forward.1} parent=1 // pred_check
      _
    $region35: #{asrgmpc_forward.1} parent=1 // pred_check_branch
      %810 = sbr.rel (0) target = $region37
    $region36: #{asrgmpc_forward.1} parent=1 // pred_region
      _
    $region37: #{asrgmpc_forward.1} parent=1 // pred_fallthru
      _
    // Predicated region
    $region38: #{asrgmpc_forward.1} parent=1 // pred_check
      _
    $region39: #{asrgmpc_forward.1} parent=1 // pred_check_branch
      %812 = sbr.rel (0) target = $region41
    $region40: #{asrgmpc_forward.1} parent=1 // pred_region
      %813 = dma.done [#allocation3], 256
    $region41: #{asrgmpc_forward.1} parent=1 // pred_fallthru
      _
    %814 = vsyncpa [#allocation3], 1
    %815 = vsyncpa [#allocation4], 1
    %816 = vsyncpa [#allocation6], 1

</llo_original>
